<compile_context>
chip_gen: v7x
topology: tpu7x:2x2x1
jax: 0.10.0
libtpu: 0.0.40
codegen_flags: <defaults>
</compile_context>

<pallas_src>
import jax
import jax.numpy as jnp
from jax.experimental import pallas as pl
from jax.experimental.pallas import tpu as pltpu


def fused_linear_kernel(x_ref, w_ref, b_ref, o_ref):
    # x_ref: VMEM (tile_b, 2)   w_ref: SMEM (2,)   b_ref: SMEM (1,)
    # o_ref: VMEM (tile_b, 1)
    x = x_ref[...]
    y = x[:, 0:1] * w_ref[0] + x[:, 1:2] * w_ref[1] + b_ref[0]
    o_ref[...] = y.astype(o_ref.dtype)


def mlp_forward(x, w1, b1, w2, b2):
    """Equivalent of fc2(fc1(x)) with fc1=Linear(2,3), fc2=Linear(3,1)."""
    B = x.shape[0]

    # Algebraic fusion of the two affine layers (tiny, done once outside).
    w_fused = (w1.T @ w2.T).astype(x.dtype)        # (2, 1)
    b_fused = (b1 @ w2.T + b2).astype(x.dtype)     # (1,)
    w_vec = w_fused[:, 0]                          # (2,) scalars for SMEM

    # Batch tiling: whole batch as one block when small, 2048-row (sublane
    # aligned) tiles when large. Partial edge tiles are masked by Pallas.
    tile_b = B if B <= 2048 else 2048
    grid = (pl.cdiv(B, tile_b),)

    return pl.pallas_call(
        fused_linear_kernel,
        out_shape=jax.ShapeDtypeStruct((B, 1), x.dtype),
        grid=grid,
        in_specs=[
            pl.BlockSpec((tile_b, 2), lambda i: (i, 0)),
            pl.BlockSpec(memory_space=pltpu.MemorySpace.SMEM),
            pl.BlockSpec(memory_space=pltpu.MemorySpace.SMEM),
        ],
        out_specs=pl.BlockSpec((tile_b, 1), lambda i: (i, 0)),
        compiler_params=pltpu.CompilerParams(
            dimension_semantics=("parallel",)),
    )(x, w_vec, b_fused)


def init_linear_params(key, out_features, in_features):
    # Mimic torch.nn.Linear default init (uniform in +/- 1/sqrt(fan_in)).
    kw, kb = jax.random.split(key)
    bound = 1.0 / (in_features ** 0.5)
    w = jax.random.uniform(kw, (out_features, in_features),
                           jnp.float32, -bound, bound)
    b = jax.random.uniform(kb, (out_features,), jnp.float32, -bound, bound)
    return w, b


def _reference(x, w1, b1, w2, b2):
    return (x @ w1.T + b1) @ w2.T + b2


if __name__ == "__main__":
    key = jax.random.PRNGKey(0)
    k_x, k_x_big, k_fc1, k_fc2 = jax.random.split(key, 4)

    w1, b1 = init_linear_params(k_fc1, 3, 2)   # fc1: Linear(2, 3)
    w2, b2 = init_linear_params(k_fc2, 1, 3)   # fc2: Linear(3, 1)

    fwd = jax.jit(mlp_forward)

    # Small-batch path (single full-array block).
    batch = 8
    x = jax.random.normal(k_x, (batch, 2), jnp.float32)
    out = fwd(x, w1, b1, w2, b2)
    jax.block_until_ready(out)
    ref = _reference(x, w1, b1, w2, b2)
    assert out.shape == (batch, 1)
    assert jnp.allclose(out, ref, atol=1e-5, rtol=1e-5)

    # Large-batch path (multi-tile grid, exercises the pipelined loop).
    batch_big = 6144
    x_big = jax.random.normal(k_x_big, (batch_big, 2), jnp.float32)
    out_big = fwd(x_big, w1, b1, w2, b2)
    jax.block_until_ready(out_big)
    ref_big = _reference(x_big, w1, b1, w2, b2)
    assert out_big.shape == (batch_big, 1)
    assert jnp.allclose(out_big, ref_big, atol=1e-5, rtol=1e-5)

    print("KERNEL_OK")
</pallas_src>

<mosaic_0001>
module attributes {stable_mosaic.version = 11 : i64} {
  func.func @fused_linear_kernel(%arg0: i32, %arg1: memref<8x2xf32, #tpu.memory_space<vmem>>, %arg2: memref<2xf32, #tpu.memory_space<smem>>, %arg3: memref<1xf32, #tpu.memory_space<smem>>, %arg4: memref<8x1xf32, #tpu.memory_space<vmem>>) attributes {dimension_semantics = [#tpu.dimension_semantics<parallel>], iteration_bounds = array<i64: 1>, scalar_prefetch = 0 : i64, scratch_operands = 0 : i64, tpu.core_type = #tpu.core_type<tc>, window_params = [{transform_indices = @transform_0, window_bounds = array<i64: 8, 2>}, {transform_indices = @transform_1, window_bounds = array<i64: 2>}, {transform_indices = @transform_2, window_bounds = array<i64: 1>}, {transform_indices = @transform_3, window_bounds = array<i64: 8, 1>}]} {
    %c0 = arith.constant 0 : index
    %c0_0 = arith.constant 0 : index
    %0 = vector.load %arg1[%c0, %c0_0] : memref<8x2xf32, #tpu.memory_space<vmem>>, vector<8x2xf32>
    %1 = vector.extract_strided_slice %0 {offsets = [0, 0], sizes = [8, 1], strides = [1, 1]} : vector<8x2xf32> to vector<8x1xf32>
    %c0_1 = arith.constant 0 : index
    %2 = memref.load %arg2[%c0_1] : memref<2xf32, #tpu.memory_space<smem>>
    %3 = vector.broadcast %2 : f32 to vector<8x1xf32>
    %4 = arith.mulf %1, %3 : vector<8x1xf32>
    %5 = vector.extract_strided_slice %0 {offsets = [0, 1], sizes = [8, 1], strides = [1, 1]} : vector<8x2xf32> to vector<8x1xf32>
    %c1 = arith.constant 1 : index
    %6 = memref.load %arg2[%c1] : memref<2xf32, #tpu.memory_space<smem>>
    %7 = vector.broadcast %6 : f32 to vector<8x1xf32>
    %8 = arith.mulf %5, %7 : vector<8x1xf32>
    %9 = arith.addf %4, %8 : vector<8x1xf32>
    %c0_2 = arith.constant 0 : index
    %10 = memref.load %arg3[%c0_2] : memref<1xf32, #tpu.memory_space<smem>>
    %11 = vector.broadcast %10 : f32 to vector<8x1xf32>
    %12 = arith.addf %9, %11 : vector<8x1xf32>
    %c0_3 = arith.constant 0 : index
    %c0_4 = arith.constant 0 : index
    %13 = vector.load %arg4[%c0_3, %c0_4] : memref<8x1xf32, #tpu.memory_space<vmem>>, vector<8x1xf32>
    tpu.vector_store %arg4[%c0_3, %c0_4], %12 {strides = array<i32>} : memref<8x1xf32, #tpu.memory_space<vmem>>, vector<8x1xf32>,
    return
  }
  func.func @transform_0(%arg0: i32) -> (i32, i32) {
    %c0_i32 = arith.constant 0 : i32
    %c0_i32_0 = arith.constant 0 : i32
    return %arg0, %c0_i32 : i32, i32
  }
  func.func @transform_1(%arg0: i32) -> i32 {
    %c0_i32 = arith.constant 0 : i32
    %c0_i32_0 = arith.constant 0 : i32
    return %c0_i32 : i32
  }
  func.func @transform_2(%arg0: i32) -> i32 {
    %c0_i32 = arith.constant 0 : i32
    %c0_i32_0 = arith.constant 0 : i32
    return %c0_i32 : i32
  }
  func.func @transform_3(%arg0: i32) -> (i32, i32) {
    %c0_i32 = arith.constant 0 : i32
    %c0_i32_0 = arith.constant 0 : i32
    return %arg0, %c0_i32 : i32, i32
  }
}

</mosaic_0001>

<llo_original>
// kernel: mlp_forward.1
$region0: #{mlp_forward.1}
  #allocation0 [shape = 'u32[]', space=smem, size = 0x4, offset = 0x4, fixed_abs, tag = 'smem constant byte address 0x4 - core index']
  #allocation1 [shape = 'u32[144,128]{1,0:T(1,128)}', space=vmem, size = 0x12000, scoped, tag = 'internal scratch']
  #allocation2 [shape = 'f32[1]{0:T(128)S(6)}', space=smem, size = 0x200, scoped, tag = 'scoped memory for mlp_forward.1']
  %s0 = inlined_call_operand.vmem [shape: f32[8,2], index: 0, kind: input, shape index: {}]
  %s1 = inlined_call_operand.vmem [shape: f32[2], index: 1, kind: input, shape index: {}]
  %s2 = inlined_call_operand.<no memory space> [shape: f32[1], index: 2, kind: input, shape index: {}]
  %s3 = inlined_call_operand.vmem [shape: f32[8,1], index: 3, kind: output, shape index: {}]
  %s4 = sld [smem:[#allocation0]]
  $region26: #{mlp_forward.1} parent=0
    _
  %s6 = ssub.s32 1, %s4
  %s7 = scalar_select 0, %s6, %s4
  %8 = sst [smem:[#allocation2]] %s2
  $region1: #{mlp_forward.1} parent=0
    #allocation3 [shape = 'u8[512]{0}', space=smem, size = 0x200, scoped, tag = 'input window, operand 1, single buffered']
    #allocation4 [shape = 's32[1]{0}', space=sflag, size = 0x4, scoped, tag = 'scoped memory for mlp_forward.1']
    %9 = vsyncpa [#allocation4], 0
    // Predicated region
    $region2: #{mlp_forward.1} parent=1 // pred_check
      _
    $region3: #{mlp_forward.1} parent=1 // pred_check_branch
      %11 = sbr.rel (0) target = $region5
    $region4: #{mlp_forward.1} parent=1 // pred_region
      _
    $region5: #{mlp_forward.1} parent=1 // pred_fallthru
      _
    // Predicated region
    $region6: #{mlp_forward.1} parent=1 // pred_check
      _
    $region7: #{mlp_forward.1} parent=1 // pred_check_branch
      %13 = sbr.rel (0) target = $region9
    $region8: #{mlp_forward.1} parent=1 // pred_region
      %s15 = ssub.s32 16, 16
      %16 = vsyncadd [#allocation4], %s15
      %s18 = sshll.u32 %s1, 4
      %s19 = int_to_ptr.vmem [resolvable:$true] %s18
      %21 = dma.vmem_to_smem %s19, 16, [#allocation3], [#allocation4]
    $region9: #{mlp_forward.1} parent=1 // pred_fallthru
      _
    // Predicated region
    $region10: #{mlp_forward.1} parent=1 // pred_check
      _
    $region11: #{mlp_forward.1} parent=1 // pred_check_branch
      %23 = sbr.rel (0) target = $region13
    $region12: #{mlp_forward.1} parent=1 // pred_region
      _
    $region13: #{mlp_forward.1} parent=1 // pred_fallthru
      _
    // Predicated region
    $region14: #{mlp_forward.1} parent=1 // pred_check
      _
    $region15: #{mlp_forward.1} parent=1 // pred_check_branch
      %25 = sbr.rel (0) target = $region17
    $region16: #{mlp_forward.1} parent=1 // pred_region
      %26 = dma.done [#allocation4], 16
    $region17: #{mlp_forward.1} parent=1 // pred_fallthru
      _
    %27 = sfence
    %v28 = vld [vmem:[%s0] sm:$0xff]
    %s29 = sld [smem:[#allocation3]]
    %v30 = vstv %s29
    %v31 = vmul.f32 %v28, %v30
    %s32 = sld [smem:[#allocation3 + $0x1]]
    %v33 = vstv %s32
    %v34 = vmul.f32 %v28, %v33
    %36 = vrot.lane.b32.xlu0 %v34, 127
    %v37 = vpop.permute.xlu0 %36
    %v39 = vadd.f32 %v31, %v37
    %s40 = sld [smem:[#allocation2]]
    %v41 = vstv %s40
    %v42 = vadd.f32 %v39, %v41
    %vm43 = vcmask 7168
    %44 = vst.msk [vmem:[%s3] sm:$0xff] %vm43, %v42
    // Predicated region
    $region18: #{mlp_forward.1} parent=1 // pred_check
      _
    $region19: #{mlp_forward.1} parent=1 // pred_check_branch
      %46 = sbr.rel (0) target = $region21
    $region20: #{mlp_forward.1} parent=1 // pred_region
      _
    $region21: #{mlp_forward.1} parent=1 // pred_fallthru
      _
    // Predicated region
    $region22: #{mlp_forward.1} parent=1 // pred_check
      _
    $region23: #{mlp_forward.1} parent=1 // pred_check_branch
      %48 = sbr.rel (0) target = $region25
    $region24: #{mlp_forward.1} parent=1 // pred_region
      _
    $region25: #{mlp_forward.1} parent=1 // pred_fallthru
      _
    %49 = vsyncpa [#allocation4], 1

</llo_original>
